<compile_context>
chip_gen: v7x
topology: tpu7x:2x2x1
jax: 0.10.0
libtpu: 0.0.40
codegen_flags: <defaults>
</compile_context>

<pallas_src>
import math

import jax
import jax.numpy as jnp
from jax.experimental import pallas as pl
from jax.experimental.pallas import tpu as pltpu


# ---------------------------------------------------------------------------
# helpers
# ---------------------------------------------------------------------------
def _round_up(n, m):
    return (n + m - 1) // m * m


def _pad128(n):
    return _round_up(n, 128)


def _pad2d(a, rows, cols):
    return jnp.pad(a, ((0, rows - a.shape[0]), (0, cols - a.shape[1])))


def _pad1d(a, cols):
    return jnp.pad(a, (0, cols - a.shape[0]))


# ---------------------------------------------------------------------------
# Pallas kernel: fused VIB forward for one batch tile.
#   refs = (x, eps, [W,b] * num_hidden, W_heads, b_heads, W_dec, b_dec, heads_out, pred_out)
# All feature dims are pre-padded to multiples of 128; weights are (in, out) so every matmul
# is a plain `h @ W + b` with lane-dense outputs.
# ---------------------------------------------------------------------------
def _make_vib_kernel(num_hidden):
    def vib_kernel(*refs):
        x_ref, eps_ref = refs[0], refs[1]
        param_refs = refs[2 : 2 + 2 * (num_hidden + 2)]
        heads_ref, pred_ref = refs[-2], refs[-1]

        # ---- encoder hidden layers: ReLU(h @ W + b); f32 activations, bf16 MXU operands
        h = x_ref[...]
        for k in range(num_hidden):
            w = param_refs[2 * k][...]
            b = param_refs[2 * k + 1][...]
            h = jnp.dot(h.astype(w.dtype), w, preferred_element_type=jnp.float32) + b
            h = jnp.maximum(h, 0.0)

        # ---- fused mu/logvar heads: one matmul, one lane-dense [mu | logvar] output slab
        w_heads = param_refs[2 * num_hidden][...]
        b_heads = param_refs[2 * num_hidden + 1][...]
        heads = (
            jnp.dot(h.astype(w_heads.dtype), w_heads, preferred_element_type=jnp.float32)
            + b_heads
        )
        heads_ref[...] = heads.astype(heads_ref.dtype)

        d_lat_p = heads.shape[-1] // 2  # static python int, multiple of 128
        mu = heads[:, :d_lat_p]
        logvar = heads[:, d_lat_p:]

        # ---- reparameterize: z = mu + eps * exp(0.5 * logvar)  (exp runs on the EUP slot)
        z = mu + eps_ref[...] * jnp.exp(0.5 * logvar)

        # ---- decoder_class: classifier head on z
        # TODO(synk): decoder_class is an injected submodule in the PyTorch spec; assumed
        # here to be a single Linear(latent_dim, num_classes) classifier head.
        w_dec = param_refs[2 * num_hidden + 2][...]
        b_dec = param_refs[2 * num_hidden + 3][...]
        pred_ref[...] = (
            jnp.dot(z.astype(w_dec.dtype), w_dec, preferred_element_type=jnp.float32) + b_dec
        ).astype(pred_ref.dtype)

    return vib_kernel


# ---------------------------------------------------------------------------
# Parameter setup (PyTorch-logical shapes; W already transposed to (in, out), f32).
# ---------------------------------------------------------------------------
def init_vib_params(key, dimensions, num_classes):
    n = len(dimensions)
    layer_dims = [(dimensions[k], dimensions[k + 1]) for k in range(n - 1)]  # hidden + mu
    layer_dims.append((dimensions[n - 2], dimensions[n - 1]))                # logvar head
    layer_dims.append((dimensions[n - 1], num_classes))                      # decoder_class
    params = []
    for d_in, d_out in layer_dims:
        kw, kb, key = jax.random.split(key, 3)
        bound = 1.0 / math.sqrt(d_in)  # PyTorch nn.Linear default uniform bound
        w = jax.random.uniform(kw, (d_in, d_out), jnp.float32, -bound, bound)
        b = jax.random.uniform(kb, (d_out,), jnp.float32, -bound, bound)
        params.append((w, b))
    return params


def _prepare_padded_params(params, dimensions, num_classes, weight_dtype):
    """Pad every feature dim to a multiple of 128, fuse the mu/logvar heads, cast W."""
    num_hidden = len(dimensions) - 2
    flat = []
    for k in range(num_hidden):
        w, b = params[k]
        wp = _pad2d(w, _pad128(w.shape[0]), _pad128(w.shape[1])).astype(weight_dtype)
        bp = _pad1d(b, _pad128(b.shape[0])).reshape(1, -1).astype(jnp.float32)
        flat += [wp, bp]

    # fuse the two heads along the output axis -> (d_hid_p, 2 * d_lat_p)
    w_mu, b_mu = params[num_hidden]
    w_lv, b_lv = params[num_hidden + 1]
    d_hid_p = _pad128(w_mu.shape[0])
    d_lat_p = _pad128(w_mu.shape[1])
    w_heads = jnp.concatenate(
        [_pad2d(w_mu, d_hid_p, d_lat_p), _pad2d(w_lv, d_hid_p, d_lat_p)], axis=1
    ).astype(weight_dtype)
    b_heads = (
        jnp.concatenate([_pad1d(b_mu, d_lat_p), _pad1d(b_lv, d_lat_p)])
        .reshape(1, -1)
        .astype(jnp.float32)
    )
    flat += [w_heads, b_heads]

    # decoder_class
    w_dec, b_dec = params[num_hidden + 2]
    ncls_p = _pad128(num_classes)
    flat += [
        _pad2d(w_dec, d_lat_p, ncls_p).astype(weight_dtype),
        _pad1d(b_dec, ncls_p).reshape(1, -1).astype(jnp.float32),
    ]
    return flat, d_lat_p, ncls_p


# ---------------------------------------------------------------------------
# Wrapper: padding, batch tiling, pallas_call plumbing.
# ---------------------------------------------------------------------------
def vib_forward(x, eps, params, dimensions, num_classes, *,
                weight_dtype=jnp.bfloat16, batch_tile=512):
    d0 = dimensions[0]
    d_latent = dimensions[-1]
    num_hidden = len(dimensions) - 2

    x2d = x.reshape(-1, d0).astype(jnp.float32)  # mirrors x.view(-1, dimensions[0])
    batch = x2d.shape[0]

    flat_params, d_lat_p, ncls_p = _prepare_padded_params(
        params, dimensions, num_classes, weight_dtype
    )
    d0_p = _pad128(d0)

    # Batch tile: multiple of 8 sublanes, capped for VMEM headroom (v7x has 64 MiB / TC).
    tb = _round_up(min(batch_tile, _round_up(batch, 8)), 8)
    b_pad = _round_up(batch, tb)
    grid = (b_pad // tb,)

    x_p = jnp.pad(x2d, ((0, b_pad - batch), (0, d0_p - d0)))
    eps_p = jnp.pad(
        eps.astype(jnp.float32), ((0, b_pad - batch), (0, d_lat_p - d_latent))
    )

    in_specs = [
        pl.BlockSpec((tb, d0_p), lambda i: (i, 0)),      # x: pipelined over batch tiles
        pl.BlockSpec((tb, d_lat_p), lambda i: (i, 0)),   # eps: pipelined over batch tiles
    ]
    # weights / biases: constant index_map -> stay VMEM-resident across grid steps
    for arr in flat_params:
        in_specs.append(pl.BlockSpec(arr.shape, lambda i: (0, 0)))

    out_shape = (
        jax.ShapeDtypeStruct((b_pad, 2 * d_lat_p), jnp.float32),  # [mu | logvar] slab
        jax.ShapeDtypeStruct((b_pad, ncls_p), jnp.float32),       # pred (padded classes)
    )
    out_specs = (
        pl.BlockSpec((tb, 2 * d_lat_p), lambda i: (i, 0)),
        pl.BlockSpec((tb, ncls_p), lambda i: (i, 0)),
    )

    # Advisory cost estimate so XLA can overlap the custom call with neighbours.
    dims_p = [d0_p] + [_pad128(d) for d in dimensions[1:-1]]
    flops = 0
    for k in range(num_hidden):
        flops += 2 * b_pad * dims_p[k] * dims_p[k + 1]
    flops += 2 * b_pad * dims_p[-1] * (2 * d_lat_p)  # fused heads
    flops += 2 * b_pad * d_lat_p * ncls_p            # decoder
    bytes_accessed = sum(int(a.size) * a.dtype.itemsize for a in flat_params)
    bytes_accessed += int(x_p.size + eps_p.size) * 4
    bytes_accessed += int(b_pad * (2 * d_lat_p + ncls_p)) * 4

    kernel = _make_vib_kernel(num_hidden)
    heads_out, pred_out = pl.pallas_call(
        kernel,
        out_shape=out_shape,
        grid=grid,
        in_specs=in_specs,
        out_specs=out_specs,
        compiler_params=pltpu.CompilerParams(
            dimension_semantics=("parallel",),   # shard batch tiles across TCs (v7x)
            vmem_limit_bytes=32 * 1024 * 1024,
        ),
        cost_estimate=pl.CostEstimate(
            flops=int(flops),
            transcendentals=int(b_pad * d_lat_p),
            bytes_accessed=int(bytes_accessed),
        ),
    )(x_p, eps_p, *flat_params)

    mu = heads_out[:batch, :d_latent]
    logvar = heads_out[:batch, d_lat_p : d_lat_p + d_latent]
    pred = pred_out[:batch, :num_classes]
    recon = x  # VIBModel_class returns recon = x unchanged
    return pred, recon, mu, logvar


# ---------------------------------------------------------------------------
# Pure-JAX reference (emulates the same bf16-operand / f32-accumulate numerics).
# ---------------------------------------------------------------------------
def vib_forward_ref(x, eps, params, dimensions, num_classes, weight_dtype=jnp.bfloat16):
    def bf(a):
        return a.astype(weight_dtype).astype(jnp.float32)

    x2d = x.reshape(-1, dimensions[0]).astype(jnp.float32)
    num_hidden = len(dimensions) - 2
    h = x2d
    for k in range(num_hidden):
        w, b = params[k]
        h = jnp.maximum(bf(h) @ bf(w) + b, 0.0)
    w_mu, b_mu = params[num_hidden]
    w_lv, b_lv = params[num_hidden + 1]
    hb = bf(h)
    mu = hb @ bf(w_mu) + b_mu
    logvar = hb @ bf(w_lv) + b_lv
    z = mu + eps.astype(jnp.float32) * jnp.exp(0.5 * logvar)
    w_dec, b_dec = params[num_hidden + 2]
    pred = bf(z) @ bf(w_dec) + b_dec
    return pred, x, mu, logvar


if __name__ == "__main__":
    key = jax.random.PRNGKey(0)
    k_x, k_eps, k_p = jax.random.split(key, 3)

    dimensions = (64, 32, 32, 16)  # encoder: 64 -> 32 -> 32 -> (mu, logvar) of size 16
    num_classes = 10               # decoder_class: Linear(16, 10)
    batch = 8

    x = jax.random.normal(k_x, (batch, dimensions[0]), jnp.float32)
    # eps supplied from the wrapper (deterministic stand-in for torch.randn_like)
    eps = jax.random.normal(k_eps, (batch, dimensions[-1]), jnp.float32)

    params = init_vib_params(k_p, dimensions, num_classes)

    pred, recon, mu, logvar = vib_forward(x, eps, params, dimensions, num_classes)
    pred, recon, mu, logvar = jax.block_until_ready((pred, recon, mu, logvar))

    pred_r, recon_r, mu_r, logvar_r = vib_forward_ref(x, eps, params, dimensions, num_classes)

    assert pred.shape == (batch, num_classes)
    assert recon.shape == x.shape
    assert mu.shape == (batch, dimensions[-1])
    assert logvar.shape == (batch, dimensions[-1])
    assert jnp.allclose(mu, mu_r, atol=1e-3, rtol=1e-3)
    assert jnp.allclose(logvar, logvar_r, atol=1e-3, rtol=1e-3)
    assert jnp.allclose(pred, pred_r, atol=1e-3, rtol=1e-3)
    assert jnp.allclose(recon, recon_r)

    print("KERNEL_OK")
</pallas_src>

<mosaic_0001>
module attributes {stable_mosaic.version = 11 : i64} {
  func.func @vib_kernel(%arg0: i32, %arg1: memref<8x128xf32, #tpu.memory_space<vmem>>, %arg2: memref<8x128xf32, #tpu.memory_space<vmem>>, %arg3: memref<128x128xbf16, #tpu.memory_space<vmem>>, %arg4: memref<1x128xf32, #tpu.memory_space<vmem>>, %arg5: memref<128x128xbf16, #tpu.memory_space<vmem>>, %arg6: memref<1x128xf32, #tpu.memory_space<vmem>>, %arg7: memref<128x256xbf16, #tpu.memory_space<vmem>>, %arg8: memref<1x256xf32, #tpu.memory_space<vmem>>, %arg9: memref<128x128xbf16, #tpu.memory_space<vmem>>, %arg10: memref<1x128xf32, #tpu.memory_space<vmem>>, %arg11: memref<8x256xf32, #tpu.memory_space<vmem>>, %arg12: memref<8x128xf32, #tpu.memory_space<vmem>>) attributes {dimension_semantics = [#tpu.dimension_semantics<parallel>], iteration_bounds = array<i64: 1>, scalar_prefetch = 0 : i64, scratch_operands = 0 : i64, tpu.core_type = #tpu.core_type<tc>, window_params = [{transform_indices = @transform_0, window_bounds = array<i64: 8, 128>}, {transform_indices = @transform_1, window_bounds = array<i64: 8, 128>}, {pipeline_mode = #tpu.pipeline_mode<synchronous>, transform_indices = @transform_2, window_bounds = array<i64: 128, 128>}, {pipeline_mode = #tpu.pipeline_mode<synchronous>, transform_indices = @transform_3, window_bounds = array<i64: 1, 128>}, {pipeline_mode = #tpu.pipeline_mode<synchronous>, transform_indices = @transform_4, window_bounds = array<i64: 128, 128>}, {pipeline_mode = #tpu.pipeline_mode<synchronous>, transform_indices = @transform_5, window_bounds = array<i64: 1, 128>}, {pipeline_mode = #tpu.pipeline_mode<synchronous>, transform_indices = @transform_6, window_bounds = array<i64: 128, 256>}, {pipeline_mode = #tpu.pipeline_mode<synchronous>, transform_indices = @transform_7, window_bounds = array<i64: 1, 256>}, {pipeline_mode = #tpu.pipeline_mode<synchronous>, transform_indices = @transform_8, window_bounds = array<i64: 128, 128>}, {pipeline_mode = #tpu.pipeline_mode<synchronous>, transform_indices = @transform_9, window_bounds = array<i64: 1, 128>}, {transform_indices = @transform_10, window_bounds = array<i64: 8, 256>}, {transform_indices = @transform_11, window_bounds = array<i64: 8, 128>}]} {
    %c0 = arith.constant 0 : index
    %c0_0 = arith.constant 0 : index
    %0 = vector.load %arg1[%c0, %c0_0] : memref<8x128xf32, #tpu.memory_space<vmem>>, vector<8x128xf32>
    %c0_1 = arith.constant 0 : index
    %c0_2 = arith.constant 0 : index
    %1 = vector.load %arg3[%c0_1, %c0_2] : memref<128x128xbf16, #tpu.memory_space<vmem>>, vector<128x128xbf16>
    %c0_3 = arith.constant 0 : index
    %c0_4 = arith.constant 0 : index
    %2 = vector.load %arg4[%c0_3, %c0_4] : memref<1x128xf32, #tpu.memory_space<vmem>>, vector<1x128xf32>
    %3 = arith.truncf %0 : vector<8x128xf32> to vector<8x128xbf16>
    %cst = arith.constant dense<0.000000e+00> : vector<8x128xf32>
    %4 = tpu.matmul %3, %1, %cst {dimension_numbers = #tpu.dot_dimension_numbers<[1], [0], [0], [1], [0, 0, 1, 1], [], []>} : vector<8x128xbf16>, vector<128x128xbf16>, vector<8x128xf32> -> vector<8x128xf32>
    %5 = vector.broadcast %2 : vector<1x128xf32> to vector<8x128xf32>
    %6 = arith.addf %4, %5 : vector<8x128xf32>
    %cst_5 = arith.constant 0.000000e+00 : f32
    %7 = vector.broadcast %cst_5 : f32 to vector<8x128xf32>
    %8 = arith.maximumf %6, %7 : vector<8x128xf32>
    %c0_6 = arith.constant 0 : index
    %c0_7 = arith.constant 0 : index
    %9 = vector.load %arg5[%c0_6, %c0_7] : memref<128x128xbf16, #tpu.memory_space<vmem>>, vector<128x128xbf16>
    %c0_8 = arith.constant 0 : index
    %c0_9 = arith.constant 0 : index
    %10 = vector.load %arg6[%c0_8, %c0_9] : memref<1x128xf32, #tpu.memory_space<vmem>>, vector<1x128xf32>
    %11 = arith.truncf %8 : vector<8x128xf32> to vector<8x128xbf16>
    %cst_10 = arith.constant dense<0.000000e+00> : vector<8x128xf32>
    %12 = tpu.matmul %11, %9, %cst_10 {dimension_numbers = #tpu.dot_dimension_numbers<[1], [0], [0], [1], [0, 0, 1, 1], [], []>} : vector<8x128xbf16>, vector<128x128xbf16>, vector<8x128xf32> -> vector<8x128xf32>
    %13 = vector.broadcast %10 : vector<1x128xf32> to vector<8x128xf32>
    %14 = arith.addf %12, %13 : vector<8x128xf32>
    %cst_11 = arith.constant 0.000000e+00 : f32
    %15 = vector.broadcast %cst_11 : f32 to vector<8x128xf32>
    %16 = arith.maximumf %14, %15 : vector<8x128xf32>
    %c0_12 = arith.constant 0 : index
    %c0_13 = arith.constant 0 : index
    %17 = vector.load %arg7[%c0_12, %c0_13] : memref<128x256xbf16, #tpu.memory_space<vmem>>, vector<128x256xbf16>
    %c0_14 = arith.constant 0 : index
    %c0_15 = arith.constant 0 : index
    %18 = vector.load %arg8[%c0_14, %c0_15] : memref<1x256xf32, #tpu.memory_space<vmem>>, vector<1x256xf32>
    %19 = arith.truncf %16 : vector<8x128xf32> to vector<8x128xbf16>
    %cst_16 = arith.constant dense<0.000000e+00> : vector<8x256xf32>
    %20 = tpu.matmul %19, %17, %cst_16 {dimension_numbers = #tpu.dot_dimension_numbers<[1], [0], [0], [1], [0, 0, 1, 1], [], []>} : vector<8x128xbf16>, vector<128x256xbf16>, vector<8x256xf32> -> vector<8x256xf32>
    %21 = vector.broadcast %18 : vector<1x256xf32> to vector<8x256xf32>
    %22 = arith.addf %20, %21 : vector<8x256xf32>
    %c0_17 = arith.constant 0 : index
    %c0_18 = arith.constant 0 : index
    %23 = vector.load %arg11[%c0_17, %c0_18] : memref<8x256xf32, #tpu.memory_space<vmem>>, vector<8x256xf32>
    tpu.vector_store %arg11[%c0_17, %c0_18], %22 {strides = array<i32>} : memref<8x256xf32, #tpu.memory_space<vmem>>, vector<8x256xf32>,
    %24 = vector.extract_strided_slice %22 {offsets = [0, 0], sizes = [8, 128], strides = [1, 1]} : vector<8x256xf32> to vector<8x128xf32>
    %25 = vector.extract_strided_slice %22 {offsets = [0, 128], sizes = [8, 128], strides = [1, 1]} : vector<8x256xf32> to vector<8x128xf32>
    %c0_19 = arith.constant 0 : index
    %c0_20 = arith.constant 0 : index
    %26 = vector.load %arg2[%c0_19, %c0_20] : memref<8x128xf32, #tpu.memory_space<vmem>>, vector<8x128xf32>
    %cst_21 = arith.constant 5.000000e-01 : f32
    %27 = vector.broadcast %cst_21 : f32 to vector<8x128xf32>
    %28 = arith.mulf %27, %25 : vector<8x128xf32>
    %29 = math.exp %28 : vector<8x128xf32>
    %30 = arith.mulf %26, %29 : vector<8x128xf32>
    %31 = arith.addf %24, %30 : vector<8x128xf32>
    %c0_22 = arith.constant 0 : index
    %c0_23 = arith.constant 0 : index
    %32 = vector.load %arg9[%c0_22, %c0_23] : memref<128x128xbf16, #tpu.memory_space<vmem>>, vector<128x128xbf16>
    %c0_24 = arith.constant 0 : index
    %c0_25 = arith.constant 0 : index
    %33 = vector.load %arg10[%c0_24, %c0_25] : memref<1x128xf32, #tpu.memory_space<vmem>>, vector<1x128xf32>
    %34 = arith.truncf %31 : vector<8x128xf32> to vector<8x128xbf16>
    %cst_26 = arith.constant dense<0.000000e+00> : vector<8x128xf32>
    %35 = tpu.matmul %34, %32, %cst_26 {dimension_numbers = #tpu.dot_dimension_numbers<[1], [0], [0], [1], [0, 0, 1, 1], [], []>} : vector<8x128xbf16>, vector<128x128xbf16>, vector<8x128xf32> -> vector<8x128xf32>
    %36 = vector.broadcast %33 : vector<1x128xf32> to vector<8x128xf32>
    %37 = arith.addf %35, %36 : vector<8x128xf32>
    %c0_27 = arith.constant 0 : index
    %c0_28 = arith.constant 0 : index
    %38 = vector.load %arg12[%c0_27, %c0_28] : memref<8x128xf32, #tpu.memory_space<vmem>>, vector<8x128xf32>
    tpu.vector_store %arg12[%c0_27, %c0_28], %37 {strides = array<i32>} : memref<8x128xf32, #tpu.memory_space<vmem>>, vector<8x128xf32>,
    return
  }
  func.func @transform_0(%arg0: i32) -> (i32, i32) {
    %c0_i32 = arith.constant 0 : i32
    %c0_i32_0 = arith.constant 0 : i32
    return %arg0, %c0_i32 : i32, i32
  }
  func.func @transform_1(%arg0: i32) -> (i32, i32) {
    %c0_i32 = arith.constant 0 : i32
    %c0_i32_0 = arith.constant 0 : i32
    return %arg0, %c0_i32 : i32, i32
  }
  func.func @transform_2(%arg0: i32) -> (i32, i32) {
    %c0_i32 = arith.constant 0 : i32
    %c0_i32_0 = arith.constant 0 : i32
    %c0_i32_1 = arith.constant 0 : i32
    return %c0_i32, %c0_i32_0 : i32, i32
  }
  func.func @transform_3(%arg0: i32) -> (i32, i32) {
    %c0_i32 = arith.constant 0 : i32
    %c0_i32_0 = arith.constant 0 : i32
    %c0_i32_1 = arith.constant 0 : i32
    return %c0_i32, %c0_i32_0 : i32, i32
  }
  func.func @transform_4(%arg0: i32) -> (i32, i32) {
    %c0_i32 = arith.constant 0 : i32
    %c0_i32_0 = arith.constant 0 : i32
    %c0_i32_1 = arith.constant 0 : i32
    return %c0_i32, %c0_i32_0 : i32, i32
  }
  func.func @transform_5(%arg0: i32) -> (i32, i32) {
    %c0_i32 = arith.constant 0 : i32
    %c0_i32_0 = arith.constant 0 : i32
    %c0_i32_1 = arith.constant 0 : i32
    return %c0_i32, %c0_i32_0 : i32, i32
  }
  func.func @transform_6(%arg0: i32) -> (i32, i32) {
    %c0_i32 = arith.constant 0 : i32
    %c0_i32_0 = arith.constant 0 : i32
    %c0_i32_1 = arith.constant 0 : i32
    return %c0_i32, %c0_i32_0 : i32, i32
  }
  func.func @transform_7(%arg0: i32) -> (i32, i32) {
    %c0_i32 = arith.constant 0 : i32
    %c0_i32_0 = arith.constant 0 : i32
    %c0_i32_1 = arith.constant 0 : i32
    return %c0_i32, %c0_i32_0 : i32, i32
  }
  func.func @transform_8(%arg0: i32) -> (i32, i32) {
    %c0_i32 = arith.constant 0 : i32
    %c0_i32_0 = arith.constant 0 : i32
    %c0_i32_1 = arith.constant 0 : i32
    return %c0_i32, %c0_i32_0 : i32, i32
  }
  func.func @transform_9(%arg0: i32) -> (i32, i32) {
    %c0_i32 = arith.constant 0 : i32
    %c0_i32_0 = arith.constant 0 : i32
    %c0_i32_1 = arith.constant 0 : i32
    return %c0_i32, %c0_i32_0 : i32, i32
  }
  func.func @transform_10(%arg0: i32) -> (i32, i32) {
    %c0_i32 = arith.constant 0 : i32
    %c0_i32_0 = arith.constant 0 : i32
    return %arg0, %c0_i32 : i32, i32
  }
  func.func @transform_11(%arg0: i32) -> (i32, i32) {
    %c0_i32 = arith.constant 0 : i32
    %c0_i32_0 = arith.constant 0 : i32
    return %arg0, %c0_i32 : i32, i32
  }
}

</mosaic_0001>

<llo_original>
// kernel: tpu_custom_call.1
$region0: #{tpu_custom_call.1}
  #allocation0 [shape = 'u32[]', space=smem, size = 0x4, offset = 0x4, fixed_abs, tag = 'smem constant byte address 0x4 - core index']
  #allocation1 [shape = 'u32[144,128]{1,0:T(1,128)}', space=vmem, size = 0x12000, scoped, tag = 'internal scratch']
  %s0 = inlined_call_operand.hbm [shape: f32[8,128], index: 0, kind: input, shape index: {}]
  %s1 = inlined_call_operand.hbm [shape: f32[8,128], index: 1, kind: input, shape index: {}]
  %s2 = inlined_call_operand.hbm [shape: bf16[128,128], index: 2, kind: input, shape index: {}]
  %s3 = inlined_call_operand.vmem [shape: f32[1,128], index: 3, kind: input, shape index: {}]
  %s4 = inlined_call_operand.hbm [shape: bf16[128,128], index: 4, kind: input, shape index: {}]
  %s5 = inlined_call_operand.vmem [shape: f32[1,128], index: 5, kind: input, shape index: {}]
  %s6 = inlined_call_operand.hbm [shape: bf16[128,256], index: 6, kind: input, shape index: {}]
  %s7 = inlined_call_operand.vmem [shape: f32[1,256], index: 7, kind: input, shape index: {}]
  %s8 = inlined_call_operand.hbm [shape: bf16[128,128], index: 8, kind: input, shape index: {}]
  %s9 = inlined_call_operand.vmem [shape: f32[1,128], index: 9, kind: input, shape index: {}]
  %s10 = inlined_call_operand.hbm [shape: f32[8,256], index: 10, kind: output, shape index: {0}]
  %s11 = inlined_call_operand.hbm [shape: f32[8,128], index: 11, kind: output, shape index: {1}]
  %12 = xla_tuple %s10, %s11
  %s13 = sld [smem:[#allocation0]]
  $region82: #{tpu_custom_call.1} parent=0
    _
  %s15 = ssub.s32 1, %s13
  %s16 = scalar_select 0, %s15, %s13
  $region1: #{tpu_custom_call.1} parent=0
    #allocation2 [shape = 'u8[4096]{0}', space=vmem, size = 0x1000, scoped, tag = 'input window, operand 0, single buffered']
    #allocation3 [shape = 's32[1]{0}', space=sflag, size = 0x4, scoped, tag = 'scoped memory for tpu_custom_call.1']
    #allocation4 [shape = 's32[1]{0}', space=sflag, size = 0x4, scoped, tag = 'scoped memory for tpu_custom_call.1']
    #allocation5 [shape = 'u8[4096]{0}', space=vmem, size = 0x1000, scoped, tag = 'input window, operand 1, single buffered']
    #allocation6 [shape = 's32[1]{0}', space=sflag, size = 0x4, scoped, tag = 'scoped memory for tpu_custom_call.1']
    #allocation7 [shape = 'u8[32768]{0}', space=vmem, size = 0x8000, scoped, tag = 'input window, operand 2, single buffered']
    #allocation8 [shape = 'u8[32768]{0}', space=vmem, size = 0x8000, scoped, tag = 'input window, operand 4, single buffered']
    #allocation9 [shape = 's32[1]{0}', space=sflag, size = 0x4, scoped, tag = 'scoped memory for tpu_custom_call.1']
    #allocation10 [shape = 'u8[65536]{0}', space=vmem, size = 0x10000, scoped, tag = 'input window, operand 6, single buffered']
    #allocation11 [shape = 'u8[32768]{0}', space=vmem, size = 0x8000, scoped, tag = 'input window, operand 8, single buffered']
    #allocation12 [shape = 's32[1]{0}', space=sflag, size = 0x4, scoped, tag = 'scoped memory for tpu_custom_call.1']
    #allocation13 [shape = 'u8[8192]{0}', space=vmem, size = 0x2000, scoped, tag = 'output window, operand 0, single buffered']
    #allocation14 [shape = 'u8[4096]{0}', space=vmem, size = 0x1000, scoped, tag = 'output window, operand 1, single buffered']
    #allocation15 [shape = 's32[1]{0}', space=sflag, size = 0x4, scoped, tag = 'scoped memory for tpu_custom_call.1']
    %17 = vsyncpa [#allocation3], 0
    %18 = vsyncpa [#allocation6], 0
    %19 = vsyncpa [#allocation9], 0
    %20 = vsyncpa [#allocation12], 0
    %21 = vsyncpa [#allocation4], 0
    %22 = vsyncpa [#allocation15], 0
    // Predicated region
    $region2: #{tpu_custom_call.1} parent=1 // pred_check
      _
    $region3: #{tpu_custom_call.1} parent=1 // pred_check_branch
      %24 = sbr.rel (0) target = $region5
    $region4: #{tpu_custom_call.1} parent=1 // pred_region
      %s26 = ssub.s32 128, 128
      %27 = vsyncadd [#allocation3], %s26
      %s29 = sshll.u32 [#allocation2], 4
      %s30 = int_to_ptr.vmem [resolvable:$true] %s29
      %32 = dma.hbm_to_vmem [thread:$0]  %s0, 128, %s30, [#allocation3]
    $region5: #{tpu_custom_call.1} parent=1 // pred_fallthru
      _
    // Predicated region
    $region6: #{tpu_custom_call.1} parent=1 // pred_check
      _
    $region7: #{tpu_custom_call.1} parent=1 // pred_check_branch
      %34 = sbr.rel (0) target = $region9
    $region8: #{tpu_custom_call.1} parent=1 // pred_region
      %s36 = ssub.s32 128, 128
      %37 = vsyncadd [#allocation6], %s36
      %s39 = sshll.u32 [#allocation5], 4
      %s40 = int_to_ptr.vmem [resolvable:$true] %s39
      %42 = dma.hbm_to_vmem [thread:$0]  %s1, 128, %s40, [#allocation6]
    $region9: #{tpu_custom_call.1} parent=1 // pred_fallthru
      _
    // Predicated region
    $region10: #{tpu_custom_call.1} parent=1 // pred_check
      _
    $region11: #{tpu_custom_call.1} parent=1 // pred_check_branch
      %44 = sbr.rel (0) target = $region13
    $region12: #{tpu_custom_call.1} parent=1 // pred_region
      %s46 = ssub.s32 1024, 1024
      %47 = vsyncadd [#allocation6], %s46
      %s48 = sshll.u32 [#allocation7], 4
      %s49 = int_to_ptr.vmem [resolvable:$true] %s48
      %54 = dma.hbm_to_vmem [thread:$0]  %s2, 1024, %s49, [#allocation6], 64, 64, 4
    $region13: #{tpu_custom_call.1} parent=1 // pred_fallthru
      _
    // Predicated region
    $region14: #{tpu_custom_call.1} parent=1 // pred_check
      _
    $region15: #{tpu_custom_call.1} parent=1 // pred_check_branch
      %56 = sbr.rel (0) target = $region17
    $region16: #{tpu_custom_call.1} parent=1 // pred_region
      _
    $region17: #{tpu_custom_call.1} parent=1 // pred_fallthru
      _
    // Predicated region
    $region18: #{tpu_custom_call.1} parent=1 // pred_check
      _
    $region19: #{tpu_custom_call.1} parent=1 // pred_check_branch
      %58 = sbr.rel (0) target = $region21
    $region20: #{tpu_custom_call.1} parent=1 // pred_region
      %s60 = ssub.s32 1024, 1024
      %61 = vsyncadd [#allocation9], %s60
      %s62 = sshll.u32 [#allocation8], 4
      %s63 = int_to_ptr.vmem [resolvable:$true] %s62
      %68 = dma.hbm_to_vmem [thread:$0]  %s4, 1024, %s63, [#allocation9], 64, 64, 4
    $region21: #{tpu_custom_call.1} parent=1 // pred_fallthru
      _
    // Predicated region
    $region22: #{tpu_custom_call.1} parent=1 // pred_check
      _
    $region23: #{tpu_custom_call.1} parent=1 // pred_check_branch
      %70 = sbr.rel (0) target = $region25
    $region24: #{tpu_custom_call.1} parent=1 // pred_region
      _
    $region25: #{tpu_custom_call.1} parent=1 // pred_fallthru
      _
    // Predicated region
    $region26: #{tpu_custom_call.1} parent=1 // pred_check
      _
    $region27: #{tpu_custom_call.1} parent=1 // pred_check_branch
      %72 = sbr.rel (0) target = $region29
    $region28: #{tpu_custom_call.1} parent=1 // pred_region
      %s74 = ssub.s32 2048, 2048
      %75 = vsyncadd [#allocation9], %s74
      %s76 = sshll.u32 [#allocation10], 4
      %s77 = int_to_ptr.vmem [resolvable:$true] %s76
      %82 = dma.hbm_to_vmem [thread:$0]  %s6, 2048, %s77, [#allocation9], 128, 128, 8
    $region29: #{tpu_custom_call.1} parent=1 // pred_fallthru
      _
    // Predicated region
    $region30: #{tpu_custom_call.1} parent=1 // pred_check
      _
    $region31: #{tpu_custom_call.1} parent=1 // pred_check_branch
      %84 = sbr.rel (0) target = $region33
    $region32: #{tpu_custom_call.1} parent=1 // pred_region
      _
    $region33: #{tpu_custom_call.1} parent=1 // pred_fallthru
      _
    // Predicated region
    $region34: #{tpu_custom_call.1} parent=1 // pred_check
      _
    $region35: #{tpu_custom_call.1} parent=1 // pred_check_branch
      %86 = sbr.rel (0) target = $region37
    $region36: #{tpu_custom_call.1} parent=1 // pred_region
      %s88 = ssub.s32 1024, 1024
      %89 = vsyncadd [#allocation12], %s88
      %s90 = sshll.u32 [#allocation11], 4
      %s91 = int_to_ptr.vmem [resolvable:$true] %s90
      %96 = dma.hbm_to_vmem [thread:$0]  %s8, 1024, %s91, [#allocation12], 64, 64, 4
    $region37: #{tpu_custom_call.1} parent=1 // pred_fallthru
      _
    // Predicated region
    $region38: #{tpu_custom_call.1} parent=1 // pred_check
      _
    $region39: #{tpu_custom_call.1} parent=1 // pred_check_branch
      %98 = sbr.rel (0) target = $region41
    $region40: #{tpu_custom_call.1} parent=1 // pred_region
      _
    $region41: #{tpu_custom_call.1} parent=1 // pred_fallthru
      _
    // Predicated region
    $region42: #{tpu_custom_call.1} parent=1 // pred_check
      _
    $region43: #{tpu_custom_call.1} parent=1 // pred_check_branch
      %100 = sbr.rel (0) target = $region45
    $region44: #{tpu_custom_call.1} parent=1 // pred_region
      %101 = dma.done [#allocation3], 128
    $region45: #{tpu_custom_call.1} parent=1 // pred_fallthru
      _
    // Predicated region
    $region46: #{tpu_custom_call.1} parent=1 // pred_check
      _
    $region47: #{tpu_custom_call.1} parent=1 // pred_check_branch
      %103 = sbr.rel (0) target = $region49
    $region48: #{tpu_custom_call.1} parent=1 // pred_region
      %104 = dma.done [#allocation6], 128
    $region49: #{tpu_custom_call.1} parent=1 // pred_fallthru
      _
    // Predicated region
    $region50: #{tpu_custom_call.1} parent=1 // pred_check
      _
    $region51: #{tpu_custom_call.1} parent=1 // pred_check_branch
      %106 = sbr.rel (0) target = $region53
    $region52: #{tpu_custom_call.1} parent=1 // pred_region
      %107 = dma.done [#allocation6], 1024
    $region53: #{tpu_custom_call.1} parent=1 // pred_fallthru
      _
    // Predicated region
    $region54: #{tpu_custom_call.1} parent=1 // pred_check
      _
    $region55: #{tpu_custom_call.1} parent=1 // pred_check_branch
      %109 = sbr.rel (0) target = $region57
    $region56: #{tpu_custom_call.1} parent=1 // pred_region
      %110 = dma.done [#allocation9], 1024
    $region57: #{tpu_custom_call.1} parent=1 // pred_fallthru
      _
    // Predicated region
    $region58: #{tpu_custom_call.1} parent=1 // pred_check
      _
    $region59: #{tpu_custom_call.1} parent=1 // pred_check_branch
      %112 = sbr.rel (0) target = $region61
    $region60: #{tpu_custom_call.1} parent=1 // pred_region
      %113 = dma.done [#allocation9], 2048
    $region61: #{tpu_custom_call.1} parent=1 // pred_fallthru
      _
    // Predicated region
    $region62: #{tpu_custom_call.1} parent=1 // pred_check
      _
    $region63: #{tpu_custom_call.1} parent=1 // pred_check_branch
      %115 = sbr.rel (0) target = $region65
    $region64: #{tpu_custom_call.1} parent=1 // pred_region
      %116 = dma.done [#allocation12], 1024
    $region65: #{tpu_custom_call.1} parent=1 // pred_fallthru
      _
    %v118 = vld [vmem:[#allocation2] sm:$0xff]
    %v119 = vld [vmem:[#allocation7] sm:$0xf]
    %v120 = vld [vmem:[#allocation7 + $0x4] sm:$0xf]
    %v121 = vld [vmem:[#allocation7 + $0x8] sm:$0xf]
    %v122 = vld [vmem:[#allocation7 + $0xc] sm:$0xf]
    %v123 = vld [vmem:[#allocation7 + $0x10] sm:$0xf]
    %v124 = vld [vmem:[#allocation7 + $0x14] sm:$0xf]
    %v125 = vld [vmem:[#allocation7 + $0x18] sm:$0xf]
    %v126 = vld [vmem:[#allocation7 + $0x1c] sm:$0xf]
    %v127 = vld [vmem:[#allocation7 + $0x20] sm:$0xf]
    %v128 = vld [vmem:[#allocation7 + $0x24] sm:$0xf]
    %v129 = vld [vmem:[#allocation7 + $0x28] sm:$0xf]
    %v130 = vld [vmem:[#allocation7 + $0x2c] sm:$0xf]
    %v131 = vld [vmem:[#allocation7 + $0x30] sm:$0xf]
    %v132 = vld [vmem:[#allocation7 + $0x34] sm:$0xf]
    %v133 = vld [vmem:[#allocation7 + $0x38] sm:$0xf]
    %v134 = vld [vmem:[#allocation7 + $0x3c] sm:$0xf]
    %v135 = vld [vmem:[%s3] sm:$0x1]
    %v136 = vpack.c.bf16 %v118, %v118
    %v138 = vlaneseq
    %v139 = vshrl.u32 %v138, 7
    %v140 = vsub.s32 0, %v139
    %v141 = vrot.slane %v135, %v140
    %v159 = vunpack.c.l.b16 %v119
    %v160 = vunpack.c.l.b16 %v120
    %v161 = vunpack.c.l.b16 %v121
    %v162 = vunpack.c.l.b16 %v122
    %v163 = vunpack.c.l.b16 %v123
    %v164 = vunpack.c.l.b16 %v124
    %v165 = vunpack.c.l.b16 %v125
    %v166 = vunpack.c.l.b16 %v126
    %v167 = vunpack.c.l.b16 %v127
    %v168 = vunpack.c.l.b16 %v128
    %v169 = vunpack.c.l.b16 %v129
    %v170 = vunpack.c.l.b16 %v130
    %v171 = vunpack.c.l.b16 %v131
    %v172 = vunpack.c.l.b16 %v132
    %v173 = vunpack.c.l.b16 %v133
    %v174 = vunpack.c.l.b16 %v134
    %v175 = vpack.c.b16 %v160, %v159
    %v176 = vpack.c.b16 %v162, %v161
    %v177 = vpack.c.b16 %v164, %v163
    %v178 = vpack.c.b16 %v166, %v165
    %v179 = vpack.c.b16 %v168, %v167
    %v180 = vpack.c.b16 %v170, %v169
    %v181 = vpack.c.b16 %v172, %v171
    %v182 = vpack.c.b16 %v174, %v173
    %191 = vmatprep.subr.bf16.mxu0 0
    %192 = vmatpush1.bf16.msra.mxu0 %v175
    %193 = vmatprep.subr.bf16.mxu0 0
    %194 = vmatpush1.bf16.msra.mxu0 %v176
    %195 = vmatprep.subr.bf16.mxu0 0
    %196 = vmatpush1.bf16.msra.mxu0 %v177
    %197 = vmatprep.subr.bf16.mxu0 0
    %198 = vmatpush1.bf16.msra.mxu0 %v178
    %199 = vmatprep.subr.bf16.mxu0 0
    %200 = vmatpush1.bf16.msra.mxu0 %v179
    %201 = vmatprep.subr.bf16.mxu0 0
    %202 = vmatpush1.bf16.msra.mxu0 %v180
    %203 = vmatprep.subr.bf16.mxu0 0
    %204 = vmatpush1.bf16.msra.mxu0 %v181
    %205 = vmatprep.subr.bf16.mxu0 0
    %206 = vmatpush1.bf16.msra.mxu0 %v182
    %207 = vmatprep.subr.bf16.mxu0 0
    %208 = vmatpush1.bf16.msra.mxu0 0
    %209 = vmatprep.subr.bf16.mxu0 0
    %210 = vmatpush1.bf16.msra.mxu0 0
    %211 = vmatprep.subr.bf16.mxu0 0
    %212 = vmatpush1.bf16.msra.mxu0 0
    %213 = vmatprep.subr.bf16.mxu0 0
    %214 = vmatpush1.bf16.msra.mxu0 0
    %215 = vmatprep.subr.bf16.mxu0 0
    %216 = vmatpush1.bf16.msra.mxu0 0
    %217 = vmatprep.subr.bf16.mxu0 0
    %218 = vmatpush1.bf16.msra.mxu0 0
    %219 = vmatprep.subr.bf16.mxu0 0
    %220 = vmatpush1.bf16.msra.mxu0 0
    %221 = vmatprep.subr.bf16.mxu0 0
    %222 = vmatpush1.bf16.msra.mxu0 0
    %223 = vmatprep.mubr.bf16.mxu0 0
    %224 = vmatmul.mubr.bf16.gmra.mrb[0].mxu0 %v136
    %v225 = vpop.f32.mrb[0].mxu0
    %v226 = vadd.f32 %v141, %v225
    %v227 = vpop.f32.mrb[0].mxu0
    %v228 = vpop.f32.mrb[0].mxu0
    %v229 = vpop.f32.mrb[0].mxu0
    %230 = vdwg.mxu0
    %v231 = vmax.f32 %v226, 0.0
    %v232 = vld [vmem:[#allocation8] sm:$0xf]
    %v233 = vld [vmem:[#allocation8 + $0x4] sm:$0xf]
    %v234 = vld [vmem:[#allocation8 + $0x8] sm:$0xf]
    %v235 = vld [vmem:[#allocation8 + $0xc] sm:$0xf]
    %v236 = vld [vmem:[#allocation8 + $0x10] sm:$0xf]
    %v237 = vld [vmem:[#allocation8 + $0x14] sm:$0xf]
    %v238 = vld [vmem:[#allocation8 + $0x18] sm:$0xf]
    %v239 = vld [vmem:[#allocation8 + $0x1c] sm:$0xf]
    %v240 = vld [vmem:[#allocation8 + $0x20] sm:$0xf]
    %v241 = vld [vmem:[#allocation8 + $0x24] sm:$0xf]
    %v242 = vld [vmem:[#allocation8 + $0x28] sm:$0xf]
    %v243 = vld [vmem:[#allocation8 + $0x2c] sm:$0xf]
    %v244 = vld [vmem:[#allocation8 + $0x30] sm:$0xf]
    %v245 = vld [vmem:[#allocation8 + $0x34] sm:$0xf]
    %v246 = vld [vmem:[#allocation8 + $0x38] sm:$0xf]
    %v247 = vld [vmem:[#allocation8 + $0x3c] sm:$0xf]
    %v248 = vld [vmem:[%s5] sm:$0x1]
    %v249 = vpack.c.bf16 %v231, %v231
    %v251 = vlaneseq
    %v252 = vshrl.u32 %v251, 7
    %v253 = vsub.s32 0, %v252
    %v254 = vrot.slane %v248, %v253
    %v272 = vunpack.c.l.b16 %v232
    %v273 = vunpack.c.l.b16 %v233
    %v274 = vunpack.c.l.b16 %v234
    %v275 = vunpack.c.l.b16 %v235
    %v276 = vunpack.c.l.b16 %v236
    %v277 = vunpack.c.l.b16 %v237
    %v278 = vunpack.c.l.b16 %v238
    %v279 = vunpack.c.l.b16 %v239
    %v280 = vunpack.c.l.b16 %v240
    %v281 = vunpack.c.l.b16 %v241
    %v282 = vunpack.c.l.b16 %v242
    %v283 = vunpack.c.l.b16 %v243
    %v284 = vunpack.c.l.b16 %v244
    %v285 = vunpack.c.l.b16 %v245
    %v286 = vunpack.c.l.b16 %v246
    %v287 = vunpack.c.l.b16 %v247
    %v288 = vpack.c.b16 %v273, %v272
    %v289 = vpack.c.b16 %v275, %v274
    %v290 = vpack.c.b16 %v277, %v276
    %v291 = vpack.c.b16 %v279, %v278
    %v292 = vpack.c.b16 %v281, %v280
    %v293 = vpack.c.b16 %v283, %v282
    %v294 = vpack.c.b16 %v285, %v284
    %v295 = vpack.c.b16 %v287, %v286
    %304 = vmatprep.subr.bf16.mxu0 0
    %305 = vmatpush1.bf16.msra.mxu0 %v288
    %306 = vmatprep.subr.bf16.mxu0 0
    %307 = vmatpush1.bf16.msra.mxu0 %v289
    %308 = vmatprep.subr.bf16.mxu0 0
    %309 = vmatpush1.bf16.msra.mxu0 %v290
    %310 = vmatprep.subr.bf16.mxu0 0
    %311 = vmatpush1.bf16.msra.mxu0 %v291
    %312 = vmatprep.subr.bf16.mxu0 0
    %313 = vmatpush1.bf16.msra.mxu0 %v292
    %314 = vmatprep.subr.bf16.mxu0 0
    %315 = vmatpush1.bf16.msra.mxu0 %v293
    %316 = vmatprep.subr.bf16.mxu0 0
    %317 = vmatpush1.bf16.msra.mxu0 %v294
    %318 = vmatprep.subr.bf16.mxu0 0
    %319 = vmatpush1.bf16.msra.mxu0 %v295
    %320 = vmatprep.subr.bf16.mxu0 0
    %321 = vmatpush1.bf16.msra.mxu0 0
    %322 = vmatprep.subr.bf16.mxu0 0
    %323 = vmatpush1.bf16.msra.mxu0 0
    %324 = vmatprep.subr.bf16.mxu0 0
    %325 = vmatpush1.bf16.msra.mxu0 0
    %326 = vmatprep.subr.bf16.mxu0 0
    %327 = vmatpush1.bf16.msra.mxu0 0
    %328 = vmatprep.subr.bf16.mxu0 0
    %329 = vmatpush1.bf16.msra.mxu0 0
    %330 = vmatprep.subr.bf16.mxu0 0
    %331 = vmatpush1.bf16.msra.mxu0 0
    %332 = vmatprep.subr.bf16.mxu0 0
    %333 = vmatpush1.bf16.msra.mxu0 0
    %334 = vmatprep.subr.bf16.mxu0 0
    %335 = vmatpush1.bf16.msra.mxu0 0
    %336 = vmatprep.mubr.bf16.mxu0 0
    %337 = vmatmul.mubr.bf16.gmra.mrb[0].mxu0 %v249
    %v338 = vpop.f32.mrb[0].mxu0
    %v339 = vadd.f32 %v254, %v338
    %v340 = vpop.f32.mrb[0].mxu0
    %v341 = vpop.f32.mrb[0].mxu0
    %v342 = vpop.f32.mrb[0].mxu0
    %343 = vdwg.mxu0
    %v344 = vmax.f32 %v339, 0.0
    %v345 = vld [vmem:[#allocation10] sm:$0xff]
    %v346 = vld [vmem:[#allocation10 + $0x8] sm:$0xff]
    %v347 = vld [vmem:[#allocation10 + $0x10] sm:$0xff]
    %v348 = vld [vmem:[#allocation10 + $0x18] sm:$0xff]
    %v349 = vld [vmem:[#allocation10 + $0x20] sm:$0xff]
    %v350 = vld [vmem:[#allocation10 + $0x28] sm:$0xff]
    %v351 = vld [vmem:[#allocation10 + $0x30] sm:$0xff]
    %v352 = vld [vmem:[#allocation10 + $0x38] sm:$0xff]
    %v353 = vld [vmem:[#allocation10 + $0x40] sm:$0xff]
    %v354 = vld [vmem:[#allocation10 + $0x48] sm:$0xff]
    %v355 = vld [vmem:[#allocation10 + $0x50] sm:$0xff]
    %v356 = vld [vmem:[#allocation10 + $0x58] sm:$0xff]
    %v357 = vld [vmem:[#allocation10 + $0x60] sm:$0xff]
    %v358 = vld [vmem:[#allocation10 + $0x68] sm:$0xff]
    %v359 = vld [vmem:[#allocation10 + $0x70] sm:$0xff]
    %v360 = vld [vmem:[#allocation10 + $0x78] sm:$0xff]
    %v361 = vld [vmem:[%s7] sm:$0x3]
    %v362 = vpack.c.bf16 %v344, %v344
    %v364 = vlaneseq
    %v365 = vshrl.u32 %v364, 7
    %v366 = vsub.s32 0, %v365
    %v367 = vrot.slane %v361, %v366
    %v368 = vlaneseq
    %v369 = vshrl.u32 %v368, 7
    %v370 = vsub.s32 1, %v369
    %v371 = vrot.slane %v361, %v370
    %v390 = vunpack.c.l.b16 %v345
    %v391 = vunpack.c.h.b16 %v345
    %v392 = vunpack.c.l.b16 %v346
    %v393 = vunpack.c.h.b16 %v346
    %v394 = vunpack.c.l.b16 %v347
    %v395 = vunpack.c.h.b16 %v347
    %v396 = vunpack.c.l.b16 %v348
    %v397 = vunpack.c.h.b16 %v348
    %v398 = vunpack.c.l.b16 %v349
    %v399 = vunpack.c.h.b16 %v349
    %v400 = vunpack.c.l.b16 %v350
    %v401 = vunpack.c.h.b16 %v350
    %v402 = vunpack.c.l.b16 %v351
    %v403 = vunpack.c.h.b16 %v351
    %v404 = vunpack.c.l.b16 %v352
    %v405 = vunpack.c.h.b16 %v352
    %v406 = vunpack.c.l.b16 %v353
    %v407 = vunpack.c.h.b16 %v353
    %v408 = vunpack.c.l.b16 %v354
    %v409 = vunpack.c.h.b16 %v354
    %v410 = vunpack.c.l.b16 %v355
    %v411 = vunpack.c.h.b16 %v355
    %v412 = vunpack.c.l.b16 %v356
    %v413 = vunpack.c.h.b16 %v356
    %v414 = vunpack.c.l.b16 %v357
    %v415 = vunpack.c.h.b16 %v357
    %v416 = vunpack.c.l.b16 %v358
    %v417 = vunpack.c.h.b16 %v358
    %v418 = vunpack.c.l.b16 %v359
    %v419 = vunpack.c.h.b16 %v359
    %v420 = vunpack.c.l.b16 %v360
    %v421 = vunpack.c.h.b16 %v360
    %v422 = vpack.c.b16 %v392, %v390
    %v423 = vpack.c.b16 %v393, %v391
    %v424 = vpack.c.b16 %v396, %v394
    %v425 = vpack.c.b16 %v397, %v395
    %v426 = vpack.c.b16 %v400, %v398
    %v427 = vpack.c.b16 %v401, %v399
    %v428 = vpack.c.b16 %v404, %v402
    %v429 = vpack.c.b16 %v405, %v403
    %v430 = vpack.c.b16 %v408, %v406
    %v431 = vpack.c.b16 %v409, %v407
    %v432 = vpack.c.b16 %v412, %v410
    %v433 = vpack.c.b16 %v413, %v411
    %v434 = vpack.c.b16 %v416, %v414
    %v435 = vpack.c.b16 %v417, %v415
    %v436 = vpack.c.b16 %v420, %v418
    %v437 = vpack.c.b16 %v421, %v419
    %454 = vmatprep.subr.bf16.mxu0 %v423
    %455 = vmatpush1.bf16.msra.mxu0 %v422
    %456 = vmatprep.subr.bf16.mxu0 %v425
    %457 = vmatpush1.bf16.msra.mxu0 %v424
    %458 = vmatprep.subr.bf16.mxu0 %v427
    %459 = vmatpush1.bf16.msra.mxu0 %v426
    %460 = vmatprep.subr.bf16.mxu0 %v429
    %461 = vmatpush1.bf16.msra.mxu0 %v428
    %462 = vmatprep.subr.bf16.mxu0 %v431
    %463 = vmatpush1.bf16.msra.mxu0 %v430
    %464 = vmatprep.subr.bf16.mxu0 %v433
    %465 = vmatpush1.bf16.msra.mxu0 %v432
    %466 = vmatprep.subr.bf16.mxu0 %v435
    %467 = vmatpush1.bf16.msra.mxu0 %v434
    %468 = vmatprep.subr.bf16.mxu0 %v437
    %469 = vmatpush1.bf16.msra.mxu0 %v436
    %470 = vmatprep.subr.bf16.mxu0 0
    %471 = vmatpush1.bf16.msra.mxu0 0
    %472 = vmatprep.subr.bf16.mxu0 0
    %473 = vmatpush1.bf16.msra.mxu0 0
    %474 = vmatprep.subr.bf16.mxu0 0
    %475 = vmatpush1.bf16.msra.mxu0 0
    %476 = vmatprep.subr.bf16.mxu0 0
    %477 = vmatpush1.bf16.msra.mxu0 0
    %478 = vmatprep.subr.bf16.mxu0 0
    %479 = vmatpush1.bf16.msra.mxu0 0
    %480 = vmatprep.subr.bf16.mxu0 0
    %481 = vmatpush1.bf16.msra.mxu0 0
    %482 = vmatprep.subr.bf16.mxu0 0
    %483 = vmatpush1.bf16.msra.mxu0 0
    %484 = vmatprep.subr.bf16.mxu0 0
    %485 = vmatpush1.bf16.msra.mxu0 0
    %486 = vmatprep.mubr.bf16.mxu0 0
    %487 = vmatmul.mubr.bf16.gmra.mrb[0].mxu0 %v362
    %v488 = vpop.f32.mrb[0].mxu0
    %v489 = vadd.f32 %v367, %v488
    %v490 = vpop.f32.mrb[0].mxu0
    %v491 = vadd.f32 %v371, %v490
    %v492 = vpop.f32.mrb[0].mxu0
    %v493 = vpop.f32.mrb[0].mxu0
    %494 = vdwg.mxu0
    %495 = vst [vmem:[#allocation13] sm:$0xff] %v489
    %496 = vst [vmem:[#allocation13 + $0x8] sm:$0xff] %v491
    %v497 = vld [vmem:[#allocation5] sm:$0xff]
    %v498 = vmul.f32 %v491, 0.5
    %v499 = vmul.f32 %v498, 1.442695
    %v500 = vpow.pop %v499
    %v501 = vmul.f32 %v497, %v500
    %v502 = vadd.f32 %v489, %v501
    %v503 = vld [vmem:[#allocation11] sm:$0xf]
    %v504 = vld [vmem:[#allocation11 + $0x4] sm:$0xf]
    %v505 = vld [vmem:[#allocation11 + $0x8] sm:$0xf]
    %v506 = vld [vmem:[#allocation11 + $0xc] sm:$0xf]
    %v507 = vld [vmem:[#allocation11 + $0x10] sm:$0xf]
    %v508 = vld [vmem:[#allocation11 + $0x14] sm:$0xf]
    %v509 = vld [vmem:[#allocation11 + $0x18] sm:$0xf]
    %v510 = vld [vmem:[#allocation11 + $0x1c] sm:$0xf]
    %v511 = vld [vmem:[#allocation11 + $0x20] sm:$0xf]
    %v512 = vld [vmem:[#allocation11 + $0x24] sm:$0xf]
    %v513 = vld [vmem:[#allocation11 + $0x28] sm:$0xf]
    %v514 = vld [vmem:[#allocation11 + $0x2c] sm:$0xf]
    %v515 = vld [vmem:[#allocation11 + $0x30] sm:$0xf]
    %v516 = vld [vmem:[#allocation11 + $0x34] sm:$0xf]
    %v517 = vld [vmem:[#allocation11 + $0x38] sm:$0xf]
    %v518 = vld [vmem:[#allocation11 + $0x3c] sm:$0xf]
    %v519 = vld [vmem:[%s9] sm:$0x1]
    %v520 = vpack.c.bf16 %v502, %v502
    %v522 = vlaneseq
    %v523 = vshrl.u32 %v522, 7
    %v524 = vsub.s32 0, %v523
    %v525 = vrot.slane %v519, %v524
    %v543 = vunpack.c.l.b16 %v503
    %v544 = vunpack.c.l.b16 %v504
    %v545 = vunpack.c.l.b16 %v505
    %v546 = vunpack.c.l.b16 %v506
    %v547 = vunpack.c.l.b16 %v507
    %v548 = vunpack.c.l.b16 %v508
    %v549 = vunpack.c.l.b16 %v509
    %v550 = vunpack.c.l.b16 %v510
    %v551 = vunpack.c.l.b16 %v511
    %v552 = vunpack.c.l.b16 %v512
    %v553 = vunpack.c.l.b16 %v513
    %v554 = vunpack.c.l.b16 %v514
    %v555 = vunpack.c.l.b16 %v515
    %v556 = vunpack.c.l.b16 %v516
    %v557 = vunpack.c.l.b16 %v517
    %v558 = vunpack.c.l.b16 %v518
    %v559 = vpack.c.b16 %v544, %v543
    %v560 = vpack.c.b16 %v546, %v545
    %v561 = vpack.c.b16 %v548, %v547
    %v562 = vpack.c.b16 %v550, %v549
    %v563 = vpack.c.b16 %v552, %v551
    %v564 = vpack.c.b16 %v554, %v553
    %v565 = vpack.c.b16 %v556, %v555
    %v566 = vpack.c.b16 %v558, %v557
    %575 = vmatprep.subr.bf16.mxu0 0
    %576 = vmatpush1.bf16.msra.mxu0 %v559
    %577 = vmatprep.subr.bf16.mxu0 0
    %578 = vmatpush1.bf16.msra.mxu0 %v560
    %579 = vmatprep.subr.bf16.mxu0 0
    %580 = vmatpush1.bf16.msra.mxu0 %v561
    %581 = vmatprep.subr.bf16.mxu0 0
    %582 = vmatpush1.bf16.msra.mxu0 %v562
    %583 = vmatprep.subr.bf16.mxu0 0
    %584 = vmatpush1.bf16.msra.mxu0 %v563
    %585 = vmatprep.subr.bf16.mxu0 0
    %586 = vmatpush1.bf16.msra.mxu0 %v564
    %587 = vmatprep.subr.bf16.mxu0 0
    %588 = vmatpush1.bf16.msra.mxu0 %v565
    %589 = vmatprep.subr.bf16.mxu0 0
    %590 = vmatpush1.bf16.msra.mxu0 %v566
    %591 = vmatprep.subr.bf16.mxu0 0
    %592 = vmatpush1.bf16.msra.mxu0 0
    %593 = vmatprep.subr.bf16.mxu0 0
    %594 = vmatpush1.bf16.msra.mxu0 0
    %595 = vmatprep.subr.bf16.mxu0 0
    %596 = vmatpush1.bf16.msra.mxu0 0
    %597 = vmatprep.subr.bf16.mxu0 0
    %598 = vmatpush1.bf16.msra.mxu0 0
    %599 = vmatprep.subr.bf16.mxu0 0
    %600 = vmatpush1.bf16.msra.mxu0 0
    %601 = vmatprep.subr.bf16.mxu0 0
    %602 = vmatpush1.bf16.msra.mxu0 0
    %603 = vmatprep.subr.bf16.mxu0 0
    %604 = vmatpush1.bf16.msra.mxu0 0
    %605 = vmatprep.subr.bf16.mxu0 0
    %606 = vmatpush1.bf16.msra.mxu0 0
    %607 = vmatprep.mubr.bf16.mxu0 0
    %608 = vmatmul.mubr.bf16.gmra.mrb[0].mxu0 %v520
    %v609 = vpop.f32.mrb[0].mxu0
    %v610 = vadd.f32 %v525, %v609
    %v611 = vpop.f32.mrb[0].mxu0
    %v612 = vpop.f32.mrb[0].mxu0
    %v613 = vpop.f32.mrb[0].mxu0
    %614 = vdwg.mxu0
    %615 = vst [vmem:[#allocation14] sm:$0xff] %v610
    // Predicated region
    $region66: #{tpu_custom_call.1} parent=1 // pred_check
      _
    $region67: #{tpu_custom_call.1} parent=1 // pred_check_branch
      %617 = sbr.rel (0) target = $region69
    $region68: #{tpu_custom_call.1} parent=1 // pred_region
      %s619 = ssub.s32 256, 256
      %620 = vsyncadd [#allocation4], %s619
      %s622 = sshll.u32 [#allocation13], 4
      %s623 = int_to_ptr.vmem [resolvable:$true] %s622
      %625 = dma.vmem_to_hbm [thread:$0]  %s623, 256, %s10, [#allocation4]
    $region69: #{tpu_custom_call.1} parent=1 // pred_fallthru
      _
    // Predicated region
    $region70: #{tpu_custom_call.1} parent=1 // pred_check
      _
    $region71: #{tpu_custom_call.1} parent=1 // pred_check_branch
      %627 = sbr.rel (0) target = $region73
    $region72: #{tpu_custom_call.1} parent=1 // pred_region
      %s629 = ssub.s32 128, 128
      %630 = vsyncadd [#allocation15], %s629
      %s632 = sshll.u32 [#allocation14], 4
      %s633 = int_to_ptr.vmem [resolvable:$true] %s632
      %635 = dma.vmem_to_hbm [thread:$0]  %s633, 128, %s11, [#allocation15]
    $region73: #{tpu_custom_call.1} parent=1 // pred_fallthru
      _
    // Predicated region
    $region74: #{tpu_custom_call.1} parent=1 // pred_check
      _
    $region75: #{tpu_custom_call.1} parent=1 // pred_check_branch
      %637 = sbr.rel (0) target = $region77
    $region76: #{tpu_custom_call.1} parent=1 // pred_region
      %638 = dma.done [#allocation4], 256
    $region77: #{tpu_custom_call.1} parent=1 // pred_fallthru
      _
    // Predicated region
    $region78: #{tpu_custom_call.1} parent=1 // pred_check
      _
    $region79: #{tpu_custom_call.1} parent=1 // pred_check_branch
      %640 = sbr.rel (0) target = $region81
    $region80: #{tpu_custom_call.1} parent=1 // pred_region
      %641 = dma.done [#allocation15], 128
    $region81: #{tpu_custom_call.1} parent=1 // pred_fallthru
      _
    %642 = vsyncpa [#allocation3], 1
    %643 = vsyncpa [#allocation6], 1
    %644 = vsyncpa [#allocation9], 1
    %645 = vsyncpa [#allocation12], 1
    %646 = vsyncpa [#allocation4], 1
    %647 = vsyncpa [#allocation15], 1

</llo_original>
